<compile_context>
chip_gen: v7x
topology: tpu7x:2x2x1
jax: 0.10.0
libtpu: 0.0.40
codegen_flags: <defaults>
</compile_context>

<pallas_src>
import functools

import jax
import jax.numpy as jnp
from jax.experimental import pallas as pl
from jax.experimental.pallas import tpu as pltpu


def _round_up(x, m):
    return ((x + m - 1) // m) * m


def _sage_layer_kernel(a_ref, hdst_ref, hsrc_ref, ws_ref, wn_ref, b_ref, o_ref,
                       acc_ref, *, apply_relu: bool, emit_ones_col: bool, deg_col: int):
    k = pl.program_id(1)

    @pl.when(k == 0)
    def _():
        acc_ref[...] = jnp.zeros_like(acc_ref)

    # int8 0/1 adjacency tile -> bf16 in-register (exact, VPU work hidden under the MXU);
    # native bf16 x bf16 MXU matmul with f32 accumulation.  Because the last hsrc column
    # is fixed to 1.0, this same dot also accumulates the in-degree in acc[:, deg_col].
    a = a_ref[...].astype(jnp.bfloat16)
    acc_ref[...] += jnp.dot(a, hsrc_ref[...], preferred_element_type=jnp.float32)

    @pl.when(k == pl.num_programs(1) - 1)
    def _():
        acc = acc_ref[...]
        deg = acc[:, deg_col:deg_col + 1]                  # exact integer counts in f32
        neigh = acc * (1.0 / jnp.maximum(deg, 1.0))        # zero in-degree -> mean = 0
        # Fused projection as two dots (no lane-axis concat copy); bf16 operands,
        # f32 accumulation, f32 bias.
        out = (jnp.dot(hdst_ref[...], ws_ref[...], preferred_element_type=jnp.float32)
               + jnp.dot(neigh.astype(jnp.bfloat16), wn_ref[...],
                         preferred_element_type=jnp.float32)
               + b_ref[...])
        if apply_relu:
            out = jnp.maximum(out, 0.0)
        if emit_ones_col:
            # Re-inject the "ones" column so the next layer's aggregation matmul also
            # produces in-degrees for free (padded weight rows are zero, so this column
            # never leaks into real outputs).
            col = jax.lax.broadcasted_iota(jnp.int32, out.shape, 1)
            out = jnp.where(col == out.shape[-1] - 1, 1.0, out)
        o_ref[...] = out.astype(o_ref.dtype)


def sage_layer(adj_i8, h, w_self, w_neigh, bias, *, apply_relu, emit_ones_col,
               tm, tk, out_dtype):
    n = adj_i8.shape[0]
    fin_p = h.shape[1]
    fout_p = w_self.shape[1]
    grid = (n // tm, n // tk)

    flops = 2 * n * n * fin_p + 2 * 2 * n * fin_p * fout_p
    bytes_accessed = (adj_i8.size                                     # int8 adj stream
                      + (n // tm) * n * fin_p * 2                     # hsrc re-streams (bf16)
                      + n * fin_p * 2                                 # hdst (bf16)
                      + 2 * fin_p * fout_p * 2 + fout_p * 4           # weights (bf16) + bias
                      + n * fout_p * jnp.dtype(out_dtype).itemsize)   # output

    # Deepen the adjacency pipeline once there are enough k-steps: the bf16/int8 path
    # shrinks per-step MXU time, so the adj DMA may otherwise become exposed.
    if (n // tk) >= 3:
        adj_spec = pl.BlockSpec((tm, tk), lambda i, k: (i, k),
                                pipeline_mode=pl.Buffered(3))
    else:
        adj_spec = pl.BlockSpec((tm, tk), lambda i, k: (i, k))

    kernel = functools.partial(_sage_layer_kernel, apply_relu=apply_relu,
                               emit_ones_col=emit_ones_col, deg_col=fin_p - 1)
    return pl.pallas_call(
        kernel,
        out_shape=jax.ShapeDtypeStruct((n, fout_p), out_dtype),
        grid=grid,
        in_specs=[
            adj_spec,                                               # adj tile (dst, src)
            pl.BlockSpec((tm, fin_p), lambda i, k: (i, 0)),         # h, dst rows (self term)
            pl.BlockSpec((tk, fin_p), lambda i, k: (k, 0)),         # h, src rows (aggregation)
            pl.BlockSpec((fin_p, fout_p), lambda i, k: (0, 0)),     # W_self  (bf16)
            pl.BlockSpec((fin_p, fout_p), lambda i, k: (0, 0)),     # W_neigh (bf16)
            pl.BlockSpec((1, fout_p), lambda i, k: (0, 0)),         # bias (f32)
        ],
        out_specs=pl.BlockSpec((tm, fout_p), lambda i, k: (i, 0)),
        scratch_shapes=[pltpu.VMEM((tm, fin_p), jnp.float32)],      # neighbor-sum + degree acc
        compiler_params=pltpu.CompilerParams(
            dimension_semantics=("parallel", "arbitrary")),
        cost_estimate=pl.CostEstimate(
            flops=flops, transcendentals=0, bytes_accessed=bytes_accessed),
    )(adj_i8, h, h, w_self, w_neigh, bias)


def graphsage_forward(adj, feats, params):
    """Two-layer GraphSAGE forward: relu(SAGEConv1(g, x)) -> SAGEConv2(g, h)."""
    n, in_feats = feats.shape
    h_feats = params["w_self1"].shape[1]

    # Feature dims padded to lane width with >= 1 spare column reserved for the
    # in-degree "ones" trick.
    fin_p = _round_up(in_feats + 1, 128)
    fh_p = _round_up(h_feats + 1, 128)

    # Node tiling: large tiles minimise hsrc re-streams (kernel is HBM-bound);
    # whole graph in a single tile when it fits.
    if n <= 1024:
        n_pad = _round_up(max(n, 128), 128)
        tm = tk = n_pad
    else:
        tm = tk = 1024
        n_pad = _round_up(n, 1024)

    # Padded adjacency built directly in int8 (no transient f32 (n_pad, n_pad) buffer).
    adj_i8 = (jnp.zeros((n_pad, n_pad), jnp.int8)
              .at[:n, :n].set(adj.astype(jnp.int8)))

    # Node features in bf16; last padded column fixed to 1.0 so the aggregation matmul
    # also produces in-degrees (padded src rows have zero adjacency columns -> harmless).
    feats_p = (jnp.zeros((n_pad, fin_p), jnp.bfloat16)
               .at[:n, :in_feats].set(feats.astype(jnp.bfloat16))
               .at[:, fin_p - 1].set(1.0))

    def pad_w(w, fi, fo):
        return (jnp.zeros((fi, fo), jnp.bfloat16)
                .at[:w.shape[0], :w.shape[1]].set(w.astype(jnp.bfloat16)))

    ws1 = pad_w(params["w_self1"], fin_p, fh_p)
    wn1 = pad_w(params["w_neigh1"], fin_p, fh_p)
    b1 = jnp.zeros((1, fh_p), jnp.float32).at[:, :h_feats].set(params["b1"])
    ws2 = pad_w(params["w_self2"], fh_p, fh_p)
    wn2 = pad_w(params["w_neigh2"], fh_p, fh_p)
    b2 = jnp.zeros((1, fh_p), jnp.float32).at[:, :h_feats].set(params["b2"])

    h = sage_layer(adj_i8, feats_p, ws1, wn1, b1, apply_relu=True,
                   emit_ones_col=True, tm=tm, tk=tk, out_dtype=jnp.bfloat16)
    out = sage_layer(adj_i8, h, ws2, wn2, b2, apply_relu=False,
                     emit_ones_col=False, tm=tm, tk=tk, out_dtype=jnp.float32)
    return out[:n, :h_feats]


def init_params(key, in_feats, h_feats):
    ks = jax.random.split(key, 4)
    scale1 = 1.0 / jnp.sqrt(in_feats)
    scale2 = 1.0 / jnp.sqrt(h_feats)
    return {
        # stored as (in, out) = PyTorch Linear weight transposed
        "w_self1": jax.random.uniform(ks[0], (in_feats, h_feats), jnp.float32,
                                      -scale1, scale1),
        "w_neigh1": jax.random.uniform(ks[1], (in_feats, h_feats), jnp.float32,
                                       -scale1, scale1),
        "b1": jnp.zeros((1, h_feats), jnp.float32),
        "w_self2": jax.random.uniform(ks[2], (h_feats, h_feats), jnp.float32,
                                      -scale2, scale2),
        "w_neigh2": jax.random.uniform(ks[3], (h_feats, h_feats), jnp.float32,
                                       -scale2, scale2),
        "b2": jnp.zeros((1, h_feats), jnp.float32),
    }


if __name__ == "__main__":
    key = jax.random.PRNGKey(0)
    k_feat, k_adj, k_param = jax.random.split(key, 3)

    num_nodes = 16
    in_feats = 8
    h_feats = 32

    # Deterministic random graph (dense adjacency, ~30% edge density, no self loops).
    adj = (jax.random.uniform(k_adj, (num_nodes, num_nodes)) < 0.3).astype(jnp.float32)
    adj = adj * (1.0 - jnp.eye(num_nodes, dtype=jnp.float32))

    feats = jax.random.normal(k_feat, (num_nodes, in_feats), jnp.float32)
    params = init_params(k_param, in_feats, h_feats)

    out = graphsage_forward(adj, feats, params)
    out = jax.block_until_ready(out)

    # Pure-JAX reference at matched precision (bf16 matmul operands, f32 accumulation).
    def bf(x):
        return x.astype(jnp.bfloat16).astype(jnp.float32)

    deg = jnp.sum(adj, axis=1, keepdims=True)
    dinv = 1.0 / jnp.maximum(deg, 1.0)
    ws1 = bf(params["w_self1"]); wn1 = bf(params["w_neigh1"])
    ws2 = bf(params["w_self2"]); wn2 = bf(params["w_neigh2"])
    f = bf(feats)
    h_ref = jnp.maximum(
        f @ ws1 + bf((adj @ f) * dinv) @ wn1 + params["b1"], 0.0)
    h_ref = bf(h_ref)
    ref = h_ref @ ws2 + bf((adj @ h_ref) * dinv) @ wn2 + params["b2"]

    assert out.shape == (num_nodes, h_feats)
    assert bool(jnp.all(jnp.isfinite(out)))
    assert jnp.allclose(out, ref, atol=2e-2), "mismatch vs reference"

    print("KERNEL_OK")
</pallas_src>

<mosaic_0001>
module attributes {stable_mosaic.version = 11 : i64} {
  func.func @_sage_layer_kernel(%arg0: i32, %arg1: i32, %arg2: memref<128x128xi8, #tpu.memory_space<vmem>>, %arg3: memref<128x128xbf16, #tpu.memory_space<vmem>>, %arg4: memref<128x128xbf16, #tpu.memory_space<vmem>>, %arg5: memref<128x128xbf16, #tpu.memory_space<vmem>>, %arg6: memref<128x128xbf16, #tpu.memory_space<vmem>>, %arg7: memref<1x128xf32, #tpu.memory_space<vmem>>, %arg8: memref<128x128xbf16, #tpu.memory_space<vmem>>, %arg9: memref<128x128xf32, #tpu.memory_space<vmem>>) attributes {dimension_semantics = [#tpu.dimension_semantics<parallel>, #tpu.dimension_semantics<arbitrary>], iteration_bounds = array<i64: 1, 1>, scalar_prefetch = 0 : i64, scratch_operands = 1 : i64, tpu.core_type = #tpu.core_type<tc>, window_params = [{transform_indices = @transform_0, window_bounds = array<i64: 128, 128>}, {transform_indices = @transform_1, window_bounds = array<i64: 128, 128>}, {transform_indices = @transform_2, window_bounds = array<i64: 128, 128>}, {pipeline_mode = #tpu.pipeline_mode<synchronous>, transform_indices = @transform_3, window_bounds = array<i64: 128, 128>}, {pipeline_mode = #tpu.pipeline_mode<synchronous>, transform_indices = @transform_4, window_bounds = array<i64: 128, 128>}, {pipeline_mode = #tpu.pipeline_mode<synchronous>, transform_indices = @transform_5, window_bounds = array<i64: 1, 128>}, {transform_indices = @transform_6, window_bounds = array<i64: 128, 128>}]} {
    %c0_i32 = arith.constant 0 : i32
    %0 = arith.cmpi eq, %arg1, %c0_i32 : i32
    %1 = arith.extui %0 : i1 to i32
    %c0_i32_0 = arith.constant 0 : i32
    %2 = arith.cmpi ne, %1, %c0_i32_0 : i32
    scf.if %2 {
      %cst_10 = arith.constant 0.000000e+00 : f32
      %13 = vector.broadcast %cst_10 : f32 to vector<128x128xf32>
      %c0_11 = arith.constant 0 : index
      %c0_12 = arith.constant 0 : index
      %14 = vector.load %arg9[%c0_11, %c0_12] : memref<128x128xf32, #tpu.memory_space<vmem>>, vector<128x128xf32>
      tpu.vector_store %arg9[%c0_11, %c0_12], %13 {strides = array<i32>} : memref<128x128xf32, #tpu.memory_space<vmem>>, vector<128x128xf32>,
    } else {
    }
    %c0 = arith.constant 0 : index
    %c0_1 = arith.constant 0 : index
    %3 = vector.load %arg2[%c0, %c0_1] : memref<128x128xi8, #tpu.memory_space<vmem>>, vector<128x128xi8>
    %4 = arith.sitofp %3 : vector<128x128xi8> to vector<128x128xbf16>
    %c0_2 = arith.constant 0 : index
    %c0_3 = arith.constant 0 : index
    %5 = vector.load %arg9[%c0_2, %c0_3] : memref<128x128xf32, #tpu.memory_space<vmem>>, vector<128x128xf32>
    %c0_4 = arith.constant 0 : index
    %c0_5 = arith.constant 0 : index
    %6 = vector.load %arg4[%c0_4, %c0_5] : memref<128x128xbf16, #tpu.memory_space<vmem>>, vector<128x128xbf16>
    %cst = arith.constant dense<0.000000e+00> : vector<128x128xf32>
    %7 = tpu.matmul %4, %6, %cst {dimension_numbers = #tpu.dot_dimension_numbers<[1], [0], [0], [1], [0, 0, 1, 1], [], []>} : vector<128x128xbf16>, vector<128x128xbf16>, vector<128x128xf32> -> vector<128x128xf32>
    %8 = arith.addf %5, %7 : vector<128x128xf32>
    %c0_6 = arith.constant 0 : index
    %c0_7 = arith.constant 0 : index
    %9 = vector.load %arg9[%c0_6, %c0_7] : memref<128x128xf32, #tpu.memory_space<vmem>>, vector<128x128xf32>
    tpu.vector_store %arg9[%c0_6, %c0_7], %8 {strides = array<i32>} : memref<128x128xf32, #tpu.memory_space<vmem>>, vector<128x128xf32>,
    %c0_i32_8 = arith.constant 0 : i32
    %10 = arith.cmpi eq, %arg1, %c0_i32_8 : i32
    %11 = arith.extui %10 : i1 to i32
    %c0_i32_9 = arith.constant 0 : i32
    %12 = arith.cmpi ne, %11, %c0_i32_9 : i32
    scf.if %12 {
      %c0_10 = arith.constant 0 : index
      %c0_11 = arith.constant 0 : index
      %13 = vector.load %arg9[%c0_10, %c0_11] : memref<128x128xf32, #tpu.memory_space<vmem>>, vector<128x128xf32>
      %14 = vector.extract_strided_slice %13 {offsets = [0, 127], sizes = [128, 1], strides = [1, 1]} : vector<128x128xf32> to vector<128x1xf32>
      %cst_12 = arith.constant 1.000000e+00 : f32
      %15 = vector.broadcast %cst_12 : f32 to vector<128x1xf32>
      %16 = arith.maximumf %14, %15 : vector<128x1xf32>
      %cst_13 = arith.constant 1.000000e+00 : f32
      %17 = vector.broadcast %cst_13 : f32 to vector<128x1xf32>
      %18 = arith.divf %17, %16 : vector<128x1xf32>
      %19 = vector.broadcast %18 : vector<128x1xf32> to vector<128x128xf32>
      %20 = arith.mulf %13, %19 : vector<128x128xf32>
      %c0_14 = arith.constant 0 : index
      %c0_15 = arith.constant 0 : index
      %21 = vector.load %arg3[%c0_14, %c0_15] : memref<128x128xbf16, #tpu.memory_space<vmem>>, vector<128x128xbf16>
      %c0_16 = arith.constant 0 : index
      %c0_17 = arith.constant 0 : index
      %22 = vector.load %arg5[%c0_16, %c0_17] : memref<128x128xbf16, #tpu.memory_space<vmem>>, vector<128x128xbf16>
      %cst_18 = arith.constant dense<0.000000e+00> : vector<128x128xf32>
      %23 = tpu.matmul %21, %22, %cst_18 {dimension_numbers = #tpu.dot_dimension_numbers<[1], [0], [0], [1], [0, 0, 1, 1], [], []>} : vector<128x128xbf16>, vector<128x128xbf16>, vector<128x128xf32> -> vector<128x128xf32>
      %24 = arith.truncf %20 : vector<128x128xf32> to vector<128x128xbf16>
      %c0_19 = arith.constant 0 : index
      %c0_20 = arith.constant 0 : index
      %25 = vector.load %arg6[%c0_19, %c0_20] : memref<128x128xbf16, #tpu.memory_space<vmem>>, vector<128x128xbf16>
      %cst_21 = arith.constant dense<0.000000e+00> : vector<128x128xf32>
      %26 = tpu.matmul %24, %25, %cst_21 {dimension_numbers = #tpu.dot_dimension_numbers<[1], [0], [0], [1], [0, 0, 1, 1], [], []>} : vector<128x128xbf16>, vector<128x128xbf16>, vector<128x128xf32> -> vector<128x128xf32>
      %27 = arith.addf %23, %26 : vector<128x128xf32>
      %c0_22 = arith.constant 0 : index
      %c0_23 = arith.constant 0 : index
      %28 = vector.load %arg7[%c0_22, %c0_23] : memref<1x128xf32, #tpu.memory_space<vmem>>, vector<1x128xf32>
      %29 = vector.broadcast %28 : vector<1x128xf32> to vector<128x128xf32>
      %30 = arith.addf %27, %29 : vector<128x128xf32>
      %cst_24 = arith.constant 0.000000e+00 : f32
      %31 = vector.broadcast %cst_24 : f32 to vector<128x128xf32>
      %32 = arith.maximumf %30, %31 : vector<128x128xf32>
      %33 = tpu.iota {dimensions = array<i32: 1>} : vector<128x128xi32>
      %c127_i32 = arith.constant 127 : i32
      %34 = vector.broadcast %c127_i32 : i32 to vector<128x128xi32>
      %35 = arith.cmpi eq, %33, %34 : vector<128x128xi32>
      %cst_25 = arith.constant 1.000000e+00 : f32
      %36 = vector.broadcast %cst_25 : f32 to vector<128x128xf32>
      %37 = arith.select %35, %36, %32 : vector<128x128xi1>, vector<128x128xf32>
      %38 = arith.truncf %37 : vector<128x128xf32> to vector<128x128xbf16>
      %c0_26 = arith.constant 0 : index
      %c0_27 = arith.constant 0 : index
      %39 = vector.load %arg8[%c0_26, %c0_27] : memref<128x128xbf16, #tpu.memory_space<vmem>>, vector<128x128xbf16>
      tpu.vector_store %arg8[%c0_26, %c0_27], %38 {strides = array<i32>} : memref<128x128xbf16, #tpu.memory_space<vmem>>, vector<128x128xbf16>,
    } else {
    }
    return
  }
  func.func @transform_0(%arg0: i32, %arg1: i32) -> (i32, i32) {
    %c0_i32 = arith.constant 0 : i32
    return %arg0, %arg1 : i32, i32
  }
  func.func @transform_1(%arg0: i32, %arg1: i32) -> (i32, i32) {
    %c0_i32 = arith.constant 0 : i32
    %c0_i32_0 = arith.constant 0 : i32
    return %arg0, %c0_i32 : i32, i32
  }
  func.func @transform_2(%arg0: i32, %arg1: i32) -> (i32, i32) {
    %c0_i32 = arith.constant 0 : i32
    %c0_i32_0 = arith.constant 0 : i32
    return %arg1, %c0_i32 : i32, i32
  }
  func.func @transform_3(%arg0: i32, %arg1: i32) -> (i32, i32) {
    %c0_i32 = arith.constant 0 : i32
    %c0_i32_0 = arith.constant 0 : i32
    %c0_i32_1 = arith.constant 0 : i32
    return %c0_i32, %c0_i32_0 : i32, i32
  }
  func.func @transform_4(%arg0: i32, %arg1: i32) -> (i32, i32) {
    %c0_i32 = arith.constant 0 : i32
    %c0_i32_0 = arith.constant 0 : i32
    %c0_i32_1 = arith.constant 0 : i32
    return %c0_i32, %c0_i32_0 : i32, i32
  }
  func.func @transform_5(%arg0: i32, %arg1: i32) -> (i32, i32) {
    %c0_i32 = arith.constant 0 : i32
    %c0_i32_0 = arith.constant 0 : i32
    %c0_i32_1 = arith.constant 0 : i32
    return %c0_i32, %c0_i32_0 : i32, i32
  }
  func.func @transform_6(%arg0: i32, %arg1: i32) -> (i32, i32) {
    %c0_i32 = arith.constant 0 : i32
    %c0_i32_0 = arith.constant 0 : i32
    return %arg0, %c0_i32 : i32, i32
  }
}

</mosaic_0001>

<llo_original>
// kernel: tpu_custom_call.1
$region0: #{tpu_custom_call.1}
  #allocation0 [shape = 'u32[]', space=smem, size = 0x4, offset = 0x4, fixed_abs, tag = 'smem constant byte address 0x4 - core index']
  #allocation1 [shape = 'u32[144,128]{1,0:T(1,128)}', space=vmem, size = 0x12000, scoped, tag = 'internal scratch']
  #allocation2 [shape = 'f32[128,128]{1,0:T(8,128)}', space=vmem, size = 0x10000, scoped, tag = 'scratch operand']
  %s0 = inlined_call_operand.hbm [shape: s8[128,128], index: 0, kind: input, shape index: {}]
  %s1 = inlined_call_operand.hbm [shape: bf16[128,128], index: 1, kind: input, shape index: {}]
  %s2 = inlined_call_operand.hbm [shape: bf16[128,128], index: 2, kind: input, shape index: {}]
  %s3 = inlined_call_operand.hbm [shape: bf16[128,128], index: 3, kind: input, shape index: {}]
  %s4 = inlined_call_operand.hbm [shape: bf16[128,128], index: 4, kind: input, shape index: {}]
  %s5 = inlined_call_operand.vmem [shape: f32[1,128], index: 5, kind: input, shape index: {}]
  %s6 = inlined_call_operand.hbm [shape: bf16[128,128], index: 6, kind: output, shape index: {}]
  %s7 = sld [smem:[#allocation0]]
  $region62: #{tpu_custom_call.1} parent=0
    _
  %s9 = ssub.s32 1, %s7
  %s10 = scalar_select 0, %s9, %s7
  $region1: #{tpu_custom_call.1} parent=0
    #allocation3 [shape = 'u8[16384]{0}', space=vmem, size = 0x4000, scoped, tag = 'input window, operand 0, single buffered']
    #allocation4 [shape = 's32[1]{0}', space=sflag, size = 0x4, scoped, tag = 'scoped memory for tpu_custom_call.1']
    #allocation5 [shape = 's32[1]{0}', space=sflag, size = 0x4, scoped, tag = 'scoped memory for tpu_custom_call.1']
    #allocation6 [shape = 'u8[32768]{0}', space=vmem, size = 0x8000, scoped, tag = 'input window, operand 1, single buffered']
    #allocation7 [shape = 's32[1]{0}', space=sflag, size = 0x4, scoped, tag = 'scoped memory for tpu_custom_call.1']
    #allocation8 [shape = 'u8[32768]{0}', space=vmem, size = 0x8000, scoped, tag = 'input window, operand 2, single buffered']
    #allocation9 [shape = 'u8[32768]{0}', space=vmem, size = 0x8000, scoped, tag = 'input window, operand 3, single buffered']
    #allocation10 [shape = 's32[1]{0}', space=sflag, size = 0x4, scoped, tag = 'scoped memory for tpu_custom_call.1']
    #allocation11 [shape = 'u8[32768]{0}', space=vmem, size = 0x8000, scoped, tag = 'input window, operand 4, single buffered']
    #allocation12 [shape = 'u8[32768]{0}', space=vmem, size = 0x8000, scoped, tag = 'output window, operand 0, single buffered']
    %11 = vsyncpa [#allocation4], 0
    %12 = vsyncpa [#allocation7], 0
    %13 = vsyncpa [#allocation10], 0
    %14 = vsyncpa [#allocation5], 0
    // Predicated region
    $region2: #{tpu_custom_call.1} parent=1 // pred_check
      _
    $region3: #{tpu_custom_call.1} parent=1 // pred_check_branch
      %16 = sbr.rel (0) target = $region5
    $region4: #{tpu_custom_call.1} parent=1 // pred_region
      %s18 = ssub.s32 512, 512
      %19 = vsyncadd [#allocation4], %s18
      %s20 = sshll.u32 [#allocation3], 4
      %s21 = int_to_ptr.vmem [resolvable:$true] %s20
      %26 = dma.hbm_to_vmem [thread:$0]  %s0, 512, %s21, [#allocation4], 128, 128, 8
    $region5: #{tpu_custom_call.1} parent=1 // pred_fallthru
      _
    // Predicated region
    $region6: #{tpu_custom_call.1} parent=1 // pred_check
      _
    $region7: #{tpu_custom_call.1} parent=1 // pred_check_branch
      %28 = sbr.rel (0) target = $region9
    $region8: #{tpu_custom_call.1} parent=1 // pred_region
      %s30 = ssub.s32 1024, 1024
      %31 = vsyncadd [#allocation7], %s30
      %s32 = sshll.u32 [#allocation6], 4
      %s33 = int_to_ptr.vmem [resolvable:$true] %s32
      %38 = dma.hbm_to_vmem [thread:$0]  %s1, 1024, %s33, [#allocation7], 64, 64, 4
    $region9: #{tpu_custom_call.1} parent=1 // pred_fallthru
      _
    // Predicated region
    $region10: #{tpu_custom_call.1} parent=1 // pred_check
      _
    $region11: #{tpu_custom_call.1} parent=1 // pred_check_branch
      %40 = sbr.rel (0) target = $region13
    $region12: #{tpu_custom_call.1} parent=1 // pred_region
      %s42 = ssub.s32 1024, 1024
      %43 = vsyncadd [#allocation7], %s42
      %s44 = sshll.u32 [#allocation8], 4
      %s45 = int_to_ptr.vmem [resolvable:$true] %s44
      %50 = dma.hbm_to_vmem [thread:$0]  %s2, 1024, %s45, [#allocation7], 64, 64, 4
    $region13: #{tpu_custom_call.1} parent=1 // pred_fallthru
      _
    // Predicated region
    $region14: #{tpu_custom_call.1} parent=1 // pred_check
      _
    $region15: #{tpu_custom_call.1} parent=1 // pred_check_branch
      %52 = sbr.rel (0) target = $region17
    $region16: #{tpu_custom_call.1} parent=1 // pred_region
      %s54 = ssub.s32 1024, 1024
      %55 = vsyncadd [#allocation10], %s54
      %s56 = sshll.u32 [#allocation9], 4
      %s57 = int_to_ptr.vmem [resolvable:$true] %s56
      %62 = dma.hbm_to_vmem [thread:$0]  %s3, 1024, %s57, [#allocation10], 64, 64, 4
    $region17: #{tpu_custom_call.1} parent=1 // pred_fallthru
      _
    // Predicated region
    $region18: #{tpu_custom_call.1} parent=1 // pred_check
      _
    $region19: #{tpu_custom_call.1} parent=1 // pred_check_branch
      %64 = sbr.rel (0) target = $region21
    $region20: #{tpu_custom_call.1} parent=1 // pred_region
      %s66 = ssub.s32 1024, 1024
      %67 = vsyncadd [#allocation10], %s66
      %s68 = sshll.u32 [#allocation11], 4
      %s69 = int_to_ptr.vmem [resolvable:$true] %s68
      %74 = dma.hbm_to_vmem [thread:$0]  %s4, 1024, %s69, [#allocation10], 64, 64, 4
    $region21: #{tpu_custom_call.1} parent=1 // pred_fallthru
      _
    // Predicated region
    $region22: #{tpu_custom_call.1} parent=1 // pred_check
      _
    $region23: #{tpu_custom_call.1} parent=1 // pred_check_branch
      %76 = sbr.rel (0) target = $region25
    $region24: #{tpu_custom_call.1} parent=1 // pred_region
      _
    $region25: #{tpu_custom_call.1} parent=1 // pred_fallthru
      _
    // Predicated region
    $region26: #{tpu_custom_call.1} parent=1 // pred_check
      _
    $region27: #{tpu_custom_call.1} parent=1 // pred_check_branch
      %78 = sbr.rel (0) target = $region29
    $region28: #{tpu_custom_call.1} parent=1 // pred_region
      %79 = dma.done [#allocation4], 512
    $region29: #{tpu_custom_call.1} parent=1 // pred_fallthru
      _
    // Predicated region
    $region30: #{tpu_custom_call.1} parent=1 // pred_check
      _
    $region31: #{tpu_custom_call.1} parent=1 // pred_check_branch
      %81 = sbr.rel (0) target = $region33
    $region32: #{tpu_custom_call.1} parent=1 // pred_region
      %82 = dma.done [#allocation7], 1024
    $region33: #{tpu_custom_call.1} parent=1 // pred_fallthru
      _
    // Predicated region
    $region34: #{tpu_custom_call.1} parent=1 // pred_check
      _
    $region35: #{tpu_custom_call.1} parent=1 // pred_check_branch
      %84 = sbr.rel (0) target = $region37
    $region36: #{tpu_custom_call.1} parent=1 // pred_region
      %85 = dma.done [#allocation7], 1024
    $region37: #{tpu_custom_call.1} parent=1 // pred_fallthru
      _
    // Predicated region
    $region38: #{tpu_custom_call.1} parent=1 // pred_check
      _
    $region39: #{tpu_custom_call.1} parent=1 // pred_check_branch
      %87 = sbr.rel (0) target = $region41
    $region40: #{tpu_custom_call.1} parent=1 // pred_region
      %88 = dma.done [#allocation10], 1024
    $region41: #{tpu_custom_call.1} parent=1 // pred_fallthru
      _
    // Predicated region
    $region42: #{tpu_custom_call.1} parent=1 // pred_check
      _
    $region43: #{tpu_custom_call.1} parent=1 // pred_check_branch
      %90 = sbr.rel (0) target = $region45
    $region44: #{tpu_custom_call.1} parent=1 // pred_region
      %91 = dma.done [#allocation10], 1024
    $region45: #{tpu_custom_call.1} parent=1 // pred_fallthru
      _
    %p93 = scmp.eq.s32.totalorder 0, 0
    // Predicated region
    $region46: #{tpu_custom_call.1} parent=1 // pred_check
      %p94 = pneg %p93
    $region47: #{tpu_custom_call.1} parent=1 // pred_check_branch
      %96 = sbr.rel (%p94) target = $region49
    $region48: #{tpu_custom_call.1} parent=1 // pred_region
      %97 = vst [vmem:[#allocation2] sm:$0xff] 0.0
      %98 = vst [vmem:[#allocation2 + $0x8] sm:$0xff] 0.0
      %99 = vst [vmem:[#allocation2 + $0x10] sm:$0xff] 0.0
      %100 = vst [vmem:[#allocation2 + $0x18] sm:$0xff] 0.0
      %101 = vst [vmem:[#allocation2 + $0x20] sm:$0xff] 0.0
      %102 = vst [vmem:[#allocation2 + $0x28] sm:$0xff] 0.0
      %103 = vst [vmem:[#allocation2 + $0x30] sm:$0xff] 0.0
      %104 = vst [vmem:[#allocation2 + $0x38] sm:$0xff] 0.0
      %105 = vst [vmem:[#allocation2 + $0x40] sm:$0xff] 0.0
      %106 = vst [vmem:[#allocation2 + $0x48] sm:$0xff] 0.0
      %107 = vst [vmem:[#allocation2 + $0x50] sm:$0xff] 0.0
      %108 = vst [vmem:[#allocation2 + $0x58] sm:$0xff] 0.0
      %109 = vst [vmem:[#allocation2 + $0x60] sm:$0xff] 0.0
      %110 = vst [vmem:[#allocation2 + $0x68] sm:$0xff] 0.0
      %111 = vst [vmem:[#allocation2 + $0x70] sm:$0xff] 0.0
      %112 = vst [vmem:[#allocation2 + $0x78] sm:$0xff] 0.0
    $region49: #{tpu_custom_call.1} parent=1 // pred_fallthru
      _
    %v113 = vld [vmem:[#allocation3] sm:$0xff]
    %v114 = vld [vmem:[#allocation3 + $0x8] sm:$0xff]
    %v115 = vld [vmem:[#allocation3 + $0x10] sm:$0xff]
    %v116 = vld [vmem:[#allocation3 + $0x18] sm:$0xff]
    %v117 = vunpack.c.l.s8.bf16 %v113
    %v118 = vunpack.c.h.s8.bf16 %v113
    %v119 = vunpack.c.l.s8.bf16 %v114
    %v120 = vunpack.c.h.s8.bf16 %v114
    %v121 = vunpack.c.l.s8.bf16 %v115
    %v122 = vunpack.c.h.s8.bf16 %v115
    %v123 = vunpack.c.l.s8.bf16 %v116
    %v124 = vunpack.c.h.s8.bf16 %v116
    %v125 = vld [vmem:[#allocation2] sm:$0xff]
    %v126 = vld [vmem:[#allocation2 + $0x8] sm:$0xff]
    %v127 = vld [vmem:[#allocation2 + $0x10] sm:$0xff]
    %v128 = vld [vmem:[#allocation2 + $0x18] sm:$0xff]
    %v129 = vld [vmem:[#allocation2 + $0x20] sm:$0xff]
    %v130 = vld [vmem:[#allocation2 + $0x28] sm:$0xff]
    %v131 = vld [vmem:[#allocation2 + $0x30] sm:$0xff]
    %v132 = vld [vmem:[#allocation2 + $0x38] sm:$0xff]
    %v133 = vld [vmem:[#allocation2 + $0x40] sm:$0xff]
    %v134 = vld [vmem:[#allocation2 + $0x48] sm:$0xff]
    %v135 = vld [vmem:[#allocation2 + $0x50] sm:$0xff]
    %v136 = vld [vmem:[#allocation2 + $0x58] sm:$0xff]
    %v137 = vld [vmem:[#allocation2 + $0x60] sm:$0xff]
    %v138 = vld [vmem:[#allocation2 + $0x68] sm:$0xff]
    %v139 = vld [vmem:[#allocation2 + $0x70] sm:$0xff]
    %v140 = vld [vmem:[#allocation2 + $0x78] sm:$0xff]
    %v141 = vld [vmem:[#allocation8] sm:$0xf]
    %v142 = vld [vmem:[#allocation8 + $0x4] sm:$0xf]
    %v143 = vld [vmem:[#allocation8 + $0x8] sm:$0xf]
    %v144 = vld [vmem:[#allocation8 + $0xc] sm:$0xf]
    %v145 = vld [vmem:[#allocation8 + $0x10] sm:$0xf]
    %v146 = vld [vmem:[#allocation8 + $0x14] sm:$0xf]
    %v147 = vld [vmem:[#allocation8 + $0x18] sm:$0xf]
    %v148 = vld [vmem:[#allocation8 + $0x1c] sm:$0xf]
    %v149 = vld [vmem:[#allocation8 + $0x20] sm:$0xf]
    %v150 = vld [vmem:[#allocation8 + $0x24] sm:$0xf]
    %v151 = vld [vmem:[#allocation8 + $0x28] sm:$0xf]
    %v152 = vld [vmem:[#allocation8 + $0x2c] sm:$0xf]
    %v153 = vld [vmem:[#allocation8 + $0x30] sm:$0xf]
    %v154 = vld [vmem:[#allocation8 + $0x34] sm:$0xf]
    %v155 = vld [vmem:[#allocation8 + $0x38] sm:$0xf]
    %v156 = vld [vmem:[#allocation8 + $0x3c] sm:$0xf]
    %v173 = vunpack.c.l.b16 %v141
    %v174 = vunpack.c.l.b16 %v142
    %v175 = vunpack.c.l.b16 %v143
    %v176 = vunpack.c.l.b16 %v144
    %v177 = vunpack.c.l.b16 %v145
    %v178 = vunpack.c.l.b16 %v146
    %v179 = vunpack.c.l.b16 %v147
    %v180 = vunpack.c.l.b16 %v148
    %v181 = vunpack.c.l.b16 %v149
    %v182 = vunpack.c.l.b16 %v150
    %v183 = vunpack.c.l.b16 %v151
    %v184 = vunpack.c.l.b16 %v152
    %v185 = vunpack.c.l.b16 %v153
    %v186 = vunpack.c.l.b16 %v154
    %v187 = vunpack.c.l.b16 %v155
    %v188 = vunpack.c.l.b16 %v156
    %v189 = vpack.c.b16 %v174, %v173
    %v190 = vpack.c.b16 %v176, %v175
    %v191 = vpack.c.b16 %v178, %v177
    %v192 = vpack.c.b16 %v180, %v179
    %v193 = vpack.c.b16 %v182, %v181
    %v194 = vpack.c.b16 %v184, %v183
    %v195 = vpack.c.b16 %v186, %v185
    %v196 = vpack.c.b16 %v188, %v187
    %205 = vmatprep.subr.bf16.mxu0 0
    %206 = vmatpush1.bf16.msra.mxu0 %v189
    %207 = vmatprep.subr.bf16.mxu0 0
    %208 = vmatpush1.bf16.msra.mxu0 %v190
    %209 = vmatprep.subr.bf16.mxu0 0
    %210 = vmatpush1.bf16.msra.mxu0 %v191
    %211 = vmatprep.subr.bf16.mxu0 0
    %212 = vmatpush1.bf16.msra.mxu0 %v192
    %213 = vmatprep.subr.bf16.mxu0 0
    %214 = vmatpush1.bf16.msra.mxu0 %v193
    %215 = vmatprep.subr.bf16.mxu0 0
    %216 = vmatpush1.bf16.msra.mxu0 %v194
    %217 = vmatprep.subr.bf16.mxu0 0
    %218 = vmatpush1.bf16.msra.mxu0 %v195
    %219 = vmatprep.subr.bf16.mxu0 0
    %220 = vmatpush1.bf16.msra.mxu0 %v196
    %221 = vmatprep.subr.bf16.mxu0 0
    %222 = vmatpush1.bf16.msra.mxu0 0
    %223 = vmatprep.subr.bf16.mxu0 0
    %224 = vmatpush1.bf16.msra.mxu0 0
    %225 = vmatprep.subr.bf16.mxu0 0
    %226 = vmatpush1.bf16.msra.mxu0 0
    %227 = vmatprep.subr.bf16.mxu0 0
    %228 = vmatpush1.bf16.msra.mxu0 0
    %229 = vmatprep.subr.bf16.mxu0 0
    %230 = vmatpush1.bf16.msra.mxu0 0
    %231 = vmatprep.subr.bf16.mxu0 0
    %232 = vmatpush1.bf16.msra.mxu0 0
    %233 = vmatprep.subr.bf16.mxu0 0
    %234 = vmatpush1.bf16.msra.mxu0 0
    %235 = vmatprep.subr.bf16.mxu0 0
    %236 = vmatpush1.bf16.msra.mxu0 0
    %237 = vmatprep.mubr.bf16.mxu0 0
    %238 = vmatmul.mubr.bf16.gmra.mrb[0].mxu0 %v117
    %v239 = vpop.f32.mrb[0].mxu0
    %v240 = vadd.f32 0.0, %v239
    %v241 = vpop.f32.mrb[0].mxu0
    %v242 = vpop.f32.mrb[0].mxu0
    %v243 = vadd.f32 0.0, %v242
    %v244 = vpop.f32.mrb[0].mxu0
    %245 = vmatprep.mubr.bf16.mxu0 0
    %246 = vmatmul.mubr.bf16.gmra.mrb[0].mxu0 %v118
    %v247 = vpop.f32.mrb[0].mxu0
    %v248 = vadd.f32 0.0, %v247
    %v249 = vpop.f32.mrb[0].mxu0
    %v250 = vpop.f32.mrb[0].mxu0
    %v251 = vadd.f32 0.0, %v250
    %v252 = vpop.f32.mrb[0].mxu0
    %253 = vmatprep.mubr.bf16.mxu0 0
    %254 = vmatmul.mubr.bf16.gmra.mrb[0].mxu0 %v119
    %v255 = vpop.f32.mrb[0].mxu0
    %v256 = vadd.f32 0.0, %v255
    %v257 = vpop.f32.mrb[0].mxu0
    %v258 = vpop.f32.mrb[0].mxu0
    %v259 = vadd.f32 0.0, %v258
    %v260 = vpop.f32.mrb[0].mxu0
    %261 = vmatprep.mubr.bf16.mxu0 0
    %262 = vmatmul.mubr.bf16.gmra.mrb[0].mxu0 %v120
    %v263 = vpop.f32.mrb[0].mxu0
    %v264 = vadd.f32 0.0, %v263
    %v265 = vpop.f32.mrb[0].mxu0
    %v266 = vpop.f32.mrb[0].mxu0
    %v267 = vadd.f32 0.0, %v266
    %v268 = vpop.f32.mrb[0].mxu0
    %269 = vmatprep.mubr.bf16.mxu0 0
    %270 = vmatmul.mubr.bf16.gmra.mrb[0].mxu0 %v121
    %v271 = vpop.f32.mrb[0].mxu0
    %v272 = vadd.f32 0.0, %v271
    %v273 = vpop.f32.mrb[0].mxu0
    %v274 = vpop.f32.mrb[0].mxu0
    %v275 = vadd.f32 0.0, %v274
    %v276 = vpop.f32.mrb[0].mxu0
    %277 = vmatprep.mubr.bf16.mxu0 0
    %278 = vmatmul.mubr.bf16.gmra.mrb[0].mxu0 %v122
    %v279 = vpop.f32.mrb[0].mxu0
    %v280 = vadd.f32 0.0, %v279
    %v281 = vpop.f32.mrb[0].mxu0
    %v282 = vpop.f32.mrb[0].mxu0
    %v283 = vadd.f32 0.0, %v282
    %v284 = vpop.f32.mrb[0].mxu0
    %285 = vmatprep.mubr.bf16.mxu0 0
    %286 = vmatmul.mubr.bf16.gmra.mrb[0].mxu0 %v123
    %v287 = vpop.f32.mrb[0].mxu0
    %v288 = vadd.f32 0.0, %v287
    %v289 = vpop.f32.mrb[0].mxu0
    %v290 = vpop.f32.mrb[0].mxu0
    %v291 = vadd.f32 0.0, %v290
    %v292 = vpop.f32.mrb[0].mxu0
    %293 = vmatprep.mubr.bf16.mxu0 0
    %294 = vmatmul.mubr.bf16.gmra.mrb[0].mxu0 %v124
    %v295 = vpop.f32.mrb[0].mxu0
    %v296 = vadd.f32 0.0, %v295
    %v297 = vpop.f32.mrb[0].mxu0
    %v298 = vpop.f32.mrb[0].mxu0
    %v299 = vadd.f32 0.0, %v298
    %v300 = vpop.f32.mrb[0].mxu0
    %301 = vdwg.mxu0
    %v302 = vadd.f32 %v125, %v240
    %v303 = vadd.f32 %v126, %v243
    %v304 = vadd.f32 %v127, %v248
    %v305 = vadd.f32 %v128, %v251
    %v306 = vadd.f32 %v129, %v256
    %v307 = vadd.f32 %v130, %v259
    %v308 = vadd.f32 %v131, %v264
    %v309 = vadd.f32 %v132, %v267
    %v310 = vadd.f32 %v133, %v272
    %v311 = vadd.f32 %v134, %v275
    %v312 = vadd.f32 %v135, %v280
    %v313 = vadd.f32 %v136, %v283
    %v314 = vadd.f32 %v137, %v288
    %v315 = vadd.f32 %v138, %v291
    %v316 = vadd.f32 %v139, %v296
    %v317 = vadd.f32 %v140, %v299
    %318 = vst [vmem:[#allocation2] sm:$0xff] %v302
    %319 = vst [vmem:[#allocation2 + $0x8] sm:$0xff] %v303
    %320 = vst [vmem:[#allocation2 + $0x10] sm:$0xff] %v304
    %321 = vst [vmem:[#allocation2 + $0x18] sm:$0xff] %v305
    %322 = vst [vmem:[#allocation2 + $0x20] sm:$0xff] %v306
    %323 = vst [vmem:[#allocation2 + $0x28] sm:$0xff] %v307
    %324 = vst [vmem:[#allocation2 + $0x30] sm:$0xff] %v308
    %325 = vst [vmem:[#allocation2 + $0x38] sm:$0xff] %v309
    %326 = vst [vmem:[#allocation2 + $0x40] sm:$0xff] %v310
    %327 = vst [vmem:[#allocation2 + $0x48] sm:$0xff] %v311
    %328 = vst [vmem:[#allocation2 + $0x50] sm:$0xff] %v312
    %329 = vst [vmem:[#allocation2 + $0x58] sm:$0xff] %v313
    %330 = vst [vmem:[#allocation2 + $0x60] sm:$0xff] %v314
    %331 = vst [vmem:[#allocation2 + $0x68] sm:$0xff] %v315
    %332 = vst [vmem:[#allocation2 + $0x70] sm:$0xff] %v316
    %333 = vst [vmem:[#allocation2 + $0x78] sm:$0xff] %v317
    // Predicated region
    $region50: #{tpu_custom_call.1} parent=1 // pred_check
      %p334 = pneg %p93
    $region51: #{tpu_custom_call.1} parent=1 // pred_check_branch
      %336 = sbr.rel (%p334) target = $region53
    $region52: #{tpu_custom_call.1} parent=1 // pred_region
      %v337 = vld [vmem:[#allocation2] sm:$0xff]
      %v338 = vld [vmem:[#allocation2 + $0x8] sm:$0xff]
      %v339 = vld [vmem:[#allocation2 + $0x10] sm:$0xff]
      %v340 = vld [vmem:[#allocation2 + $0x18] sm:$0xff]
      %v341 = vld [vmem:[#allocation2 + $0x20] sm:$0xff]
      %v342 = vld [vmem:[#allocation2 + $0x28] sm:$0xff]
      %v343 = vld [vmem:[#allocation2 + $0x30] sm:$0xff]
      %v344 = vld [vmem:[#allocation2 + $0x38] sm:$0xff]
      %v345 = vld [vmem:[#allocation2 + $0x40] sm:$0xff]
      %v346 = vld [vmem:[#allocation2 + $0x48] sm:$0xff]
      %v347 = vld [vmem:[#allocation2 + $0x50] sm:$0xff]
      %v348 = vld [vmem:[#allocation2 + $0x58] sm:$0xff]
      %v349 = vld [vmem:[#allocation2 + $0x60] sm:$0xff]
      %v350 = vld [vmem:[#allocation2 + $0x68] sm:$0xff]
      %v351 = vld [vmem:[#allocation2 + $0x70] sm:$0xff]
      %v352 = vld [vmem:[#allocation2 + $0x78] sm:$0xff]
      %v353 = vmax.f32 %v337, 1.0
      %v354 = vmax.f32 %v338, 1.0
      %v355 = vmax.f32 %v339, 1.0
      %v356 = vmax.f32 %v340, 1.0
      %v357 = vmax.f32 %v341, 1.0
      %v358 = vmax.f32 %v342, 1.0
      %v359 = vmax.f32 %v343, 1.0
      %v360 = vmax.f32 %v344, 1.0
      %v361 = vmax.f32 %v345, 1.0
      %v362 = vmax.f32 %v346, 1.0
      %v363 = vmax.f32 %v347, 1.0
      %v364 = vmax.f32 %v348, 1.0
      %v365 = vmax.f32 %v349, 1.0
      %v366 = vmax.f32 %v350, 1.0
      %v367 = vmax.f32 %v351, 1.0
      %v368 = vmax.f32 %v352, 1.0
      %v369 = vrcp.pop %v353
      %v370 = vmul.f32 1.0, %v369
      %v371 = vrcp.pop %v354
      %v372 = vmul.f32 1.0, %v371
      %v373 = vrcp.pop %v355
      %v374 = vmul.f32 1.0, %v373
      %v375 = vrcp.pop %v356
      %v376 = vmul.f32 1.0, %v375
      %v377 = vrcp.pop %v357
      %v378 = vmul.f32 1.0, %v377
      %v379 = vrcp.pop %v358
      %v380 = vmul.f32 1.0, %v379
      %v381 = vrcp.pop %v359
      %v382 = vmul.f32 1.0, %v381
      %v383 = vrcp.pop %v360
      %v384 = vmul.f32 1.0, %v383
      %v385 = vrcp.pop %v361
      %v386 = vmul.f32 1.0, %v385
      %v387 = vrcp.pop %v362
      %v388 = vmul.f32 1.0, %v387
      %v389 = vrcp.pop %v363
      %v390 = vmul.f32 1.0, %v389
      %v391 = vrcp.pop %v364
      %v392 = vmul.f32 1.0, %v391
      %v393 = vrcp.pop %v365
      %v394 = vmul.f32 1.0, %v393
      %v395 = vrcp.pop %v366
      %v396 = vmul.f32 1.0, %v395
      %v397 = vrcp.pop %v367
      %v398 = vmul.f32 1.0, %v397
      %v399 = vrcp.pop %v368
      %v400 = vmul.f32 1.0, %v399
      %402 = vset.pattern.permute.xlu0 127
      %403 = vperm.xlu0 %402, %v370
      %v404 = vpop.permute.xlu0 %403
      %407 = vset.pattern.permute.xlu0 127
      %408 = vperm.xlu0 %407, %v372
      %v409 = vpop.permute.xlu0 %408
      %412 = vset.pattern.permute.xlu0 127
      %413 = vperm.xlu0 %412, %v374
      %v414 = vpop.permute.xlu0 %413
      %417 = vset.pattern.permute.xlu0 127
      %418 = vperm.xlu0 %417, %v376
      %v419 = vpop.permute.xlu0 %418
      %422 = vset.pattern.permute.xlu0 127
      %423 = vperm.xlu0 %422, %v378
      %v424 = vpop.permute.xlu0 %423
      %427 = vset.pattern.permute.xlu0 127
      %428 = vperm.xlu0 %427, %v380
      %v429 = vpop.permute.xlu0 %428
      %432 = vset.pattern.permute.xlu0 127
      %433 = vperm.xlu0 %432, %v382
      %v434 = vpop.permute.xlu0 %433
      %437 = vset.pattern.permute.xlu0 127
      %438 = vperm.xlu0 %437, %v384
      %v439 = vpop.permute.xlu0 %438
      %442 = vset.pattern.permute.xlu0 127
      %443 = vperm.xlu0 %442, %v386
      %v444 = vpop.permute.xlu0 %443
      %447 = vset.pattern.permute.xlu0 127
      %448 = vperm.xlu0 %447, %v388
      %v449 = vpop.permute.xlu0 %448
      %452 = vset.pattern.permute.xlu0 127
      %453 = vperm.xlu0 %452, %v390
      %v454 = vpop.permute.xlu0 %453
      %457 = vset.pattern.permute.xlu0 127
      %458 = vperm.xlu0 %457, %v392
      %v459 = vpop.permute.xlu0 %458
      %462 = vset.pattern.permute.xlu0 127
      %463 = vperm.xlu0 %462, %v394
      %v464 = vpop.permute.xlu0 %463
      %467 = vset.pattern.permute.xlu0 127
      %468 = vperm.xlu0 %467, %v396
      %v469 = vpop.permute.xlu0 %468
      %472 = vset.pattern.permute.xlu0 127
      %473 = vperm.xlu0 %472, %v398
      %v474 = vpop.permute.xlu0 %473
      %477 = vset.pattern.permute.xlu0 127
      %478 = vperm.xlu0 %477, %v400
      %v479 = vpop.permute.xlu0 %478
      %v481 = vmul.f32 %v337, %v404
      %v482 = vmul.f32 %v338, %v409
      %v483 = vmul.f32 %v339, %v414
      %v484 = vmul.f32 %v340, %v419
      %v485 = vmul.f32 %v341, %v424
      %v486 = vmul.f32 %v342, %v429
      %v487 = vmul.f32 %v343, %v434
      %v488 = vmul.f32 %v344, %v439
      %v489 = vmul.f32 %v345, %v444
      %v490 = vmul.f32 %v346, %v449
      %v491 = vmul.f32 %v347, %v454
      %v492 = vmul.f32 %v348, %v459
      %v493 = vmul.f32 %v349, %v464
      %v494 = vmul.f32 %v350, %v469
      %v495 = vmul.f32 %v351, %v474
      %v496 = vmul.f32 %v352, %v479
      %v497 = vld [vmem:[#allocation6] sm:$0xf]
      %v498 = vld [vmem:[#allocation6 + $0x4] sm:$0xf]
      %v499 = vld [vmem:[#allocation6 + $0x8] sm:$0xf]
      %v500 = vld [vmem:[#allocation6 + $0xc] sm:$0xf]
      %v501 = vld [vmem:[#allocation6 + $0x10] sm:$0xf]
      %v502 = vld [vmem:[#allocation6 + $0x14] sm:$0xf]
      %v503 = vld [vmem:[#allocation6 + $0x18] sm:$0xf]
      %v504 = vld [vmem:[#allocation6 + $0x1c] sm:$0xf]
      %v505 = vld [vmem:[#allocation6 + $0x20] sm:$0xf]
      %v506 = vld [vmem:[#allocation6 + $0x24] sm:$0xf]
      %v507 = vld [vmem:[#allocation6 + $0x28] sm:$0xf]
      %v508 = vld [vmem:[#allocation6 + $0x2c] sm:$0xf]
      %v509 = vld [vmem:[#allocation6 + $0x30] sm:$0xf]
      %v510 = vld [vmem:[#allocation6 + $0x34] sm:$0xf]
      %v511 = vld [vmem:[#allocation6 + $0x38] sm:$0xf]
      %v512 = vld [vmem:[#allocation6 + $0x3c] sm:$0xf]
      %v513 = vld [vmem:[#allocation9] sm:$0xf]
      %v514 = vld [vmem:[#allocation9 + $0x4] sm:$0xf]
      %v515 = vld [vmem:[#allocation9 + $0x8] sm:$0xf]
      %v516 = vld [vmem:[#allocation9 + $0xc] sm:$0xf]
      %v517 = vld [vmem:[#allocation9 + $0x10] sm:$0xf]
      %v518 = vld [vmem:[#allocation9 + $0x14] sm:$0xf]
      %v519 = vld [vmem:[#allocation9 + $0x18] sm:$0xf]
      %v520 = vld [vmem:[#allocation9 + $0x1c] sm:$0xf]
      %v521 = vld [vmem:[#allocation9 + $0x20] sm:$0xf]
      %v522 = vld [vmem:[#allocation9 + $0x24] sm:$0xf]
      %v523 = vld [vmem:[#allocation9 + $0x28] sm:$0xf]
      %v524 = vld [vmem:[#allocation9 + $0x2c] sm:$0xf]
      %v525 = vld [vmem:[#allocation9 + $0x30] sm:$0xf]
      %v526 = vld [vmem:[#allocation9 + $0x34] sm:$0xf]
      %v527 = vld [vmem:[#allocation9 + $0x38] sm:$0xf]
      %v528 = vld [vmem:[#allocation9 + $0x3c] sm:$0xf]
      %v529 = vpack.c.bf16 %v482, %v481
      %v530 = vpack.c.bf16 %v484, %v483
      %v531 = vpack.c.bf16 %v486, %v485
      %v532 = vpack.c.bf16 %v488, %v487
      %v533 = vpack.c.bf16 %v490, %v489
      %v534 = vpack.c.bf16 %v492, %v491
      %v535 = vpack.c.bf16 %v494, %v493
      %v536 = vpack.c.bf16 %v496, %v495
      %v537 = vld [vmem:[#allocation11] sm:$0xf]
      %v538 = vld [vmem:[#allocation11 + $0x4] sm:$0xf]
      %v539 = vld [vmem:[#allocation11 + $0x8] sm:$0xf]
      %v540 = vld [vmem:[#allocation11 + $0xc] sm:$0xf]
      %v541 = vld [vmem:[#allocation11 + $0x10] sm:$0xf]
      %v542 = vld [vmem:[#allocation11 + $0x14] sm:$0xf]
      %v543 = vld [vmem:[#allocation11 + $0x18] sm:$0xf]
      %v544 = vld [vmem:[#allocation11 + $0x1c] sm:$0xf]
      %v545 = vld [vmem:[#allocation11 + $0x20] sm:$0xf]
      %v546 = vld [vmem:[#allocation11 + $0x24] sm:$0xf]
      %v547 = vld [vmem:[#allocation11 + $0x28] sm:$0xf]
      %v548 = vld [vmem:[#allocation11 + $0x2c] sm:$0xf]
      %v549 = vld [vmem:[#allocation11 + $0x30] sm:$0xf]
      %v550 = vld [vmem:[#allocation11 + $0x34] sm:$0xf]
      %v551 = vld [vmem:[#allocation11 + $0x38] sm:$0xf]
      %v552 = vld [vmem:[#allocation11 + $0x3c] sm:$0xf]
      %v569 = vunpack.c.l.b16 %v537
      %v570 = vunpack.c.l.b16 %v538
      %v571 = vunpack.c.l.b16 %v539
      %v572 = vunpack.c.l.b16 %v540
      %v573 = vunpack.c.l.b16 %v541
      %v574 = vunpack.c.l.b16 %v542
      %v575 = vunpack.c.l.b16 %v543
      %v576 = vunpack.c.l.b16 %v544
      %v577 = vunpack.c.l.b16 %v545
      %v578 = vunpack.c.l.b16 %v546
      %v579 = vunpack.c.l.b16 %v547
      %v580 = vunpack.c.l.b16 %v548
      %v581 = vunpack.c.l.b16 %v549
      %v582 = vunpack.c.l.b16 %v550
      %v583 = vunpack.c.l.b16 %v551
      %v584 = vunpack.c.l.b16 %v552
      %v585 = vpack.c.b16 %v570, %v569
      %v586 = vpack.c.b16 %v572, %v571
      %v587 = vpack.c.b16 %v574, %v573
      %v588 = vpack.c.b16 %v576, %v575
      %v589 = vpack.c.b16 %v578, %v577
      %v590 = vpack.c.b16 %v580, %v579
      %v591 = vpack.c.b16 %v582, %v581
      %v592 = vpack.c.b16 %v584, %v583
      %601 = vmatprep.subr.bf16.mxu0 0
      %602 = vmatpush1.bf16.msra.mxu0 %v585
      %603 = vmatprep.subr.bf16.mxu0 0
      %604 = vmatpush1.bf16.msra.mxu0 %v586
      %605 = vmatprep.subr.bf16.mxu0 0
      %606 = vmatpush1.bf16.msra.mxu0 %v587
      %607 = vmatprep.subr.bf16.mxu0 0
      %608 = vmatpush1.bf16.msra.mxu0 %v588
      %609 = vmatprep.subr.bf16.mxu0 0
      %610 = vmatpush1.bf16.msra.mxu0 %v589
      %611 = vmatprep.subr.bf16.mxu0 0
      %612 = vmatpush1.bf16.msra.mxu0 %v590
      %613 = vmatprep.subr.bf16.mxu0 0
      %614 = vmatpush1.bf16.msra.mxu0 %v591
      %615 = vmatprep.subr.bf16.mxu0 0
      %616 = vmatpush1.bf16.msra.mxu0 %v592
      %617 = vmatprep.subr.bf16.mxu0 0
      %618 = vmatpush1.bf16.msra.mxu0 0
      %619 = vmatprep.subr.bf16.mxu0 0
      %620 = vmatpush1.bf16.msra.mxu0 0
      %621 = vmatprep.subr.bf16.mxu0 0
      %622 = vmatpush1.bf16.msra.mxu0 0
      %623 = vmatprep.subr.bf16.mxu0 0
      %624 = vmatpush1.bf16.msra.mxu0 0
      %625 = vmatprep.subr.bf16.mxu0 0
      %626 = vmatpush1.bf16.msra.mxu0 0
      %627 = vmatprep.subr.bf16.mxu0 0
      %628 = vmatpush1.bf16.msra.mxu0 0
      %629 = vmatprep.subr.bf16.mxu0 0
      %630 = vmatpush1.bf16.msra.mxu0 0
      %631 = vmatprep.subr.bf16.mxu0 0
      %632 = vmatpush1.bf16.msra.mxu0 0
      %633 = vmatprep.mubr.bf16.mxu0 0
      %634 = vmatmul.mubr.bf16.gmra.mrb[0].mxu0 %v529
      %v635 = vpop.f32.mrb[0].mxu0
      %v636 = vadd.f32 0.0, %v635
      %v637 = vpop.f32.mrb[0].mxu0
      %v638 = vpop.f32.mrb[0].mxu0
      %v639 = vadd.f32 0.0, %v638
      %v640 = vpop.f32.mrb[0].mxu0
      %641 = vmatprep.mubr.bf16.mxu0 0
      %642 = vmatmul.mubr.bf16.gmra.mrb[0].mxu0 %v530
      %v643 = vpop.f32.mrb[0].mxu0
      %v644 = vadd.f32 0.0, %v643
      %v645 = vpop.f32.mrb[0].mxu0
      %v646 = vpop.f32.mrb[0].mxu0
      %v647 = vadd.f32 0.0, %v646
      %v648 = vpop.f32.mrb[0].mxu0
      %649 = vmatprep.mubr.bf16.mxu0 0
      %650 = vmatmul.mubr.bf16.gmra.mrb[0].mxu0 %v531
      %v651 = vpop.f32.mrb[0].mxu0
      %v652 = vadd.f32 0.0, %v651
      %v653 = vpop.f32.mrb[0].mxu0
      %v654 = vpop.f32.mrb[0].mxu0
      %v655 = vadd.f32 0.0, %v654
      %v656 = vpop.f32.mrb[0].mxu0
      %657 = vmatprep.mubr.bf16.mxu0 0
      %658 = vmatmul.mubr.bf16.gmra.mrb[0].mxu0 %v532
      %v659 = vpop.f32.mrb[0].mxu0
      %v660 = vadd.f32 0.0, %v659
      %v661 = vpop.f32.mrb[0].mxu0
      %v662 = vpop.f32.mrb[0].mxu0
      %v663 = vadd.f32 0.0, %v662
      %v664 = vpop.f32.mrb[0].mxu0
      %665 = vmatprep.mubr.bf16.mxu0 0
      %666 = vmatmul.mubr.bf16.gmra.mrb[0].mxu0 %v533
      %v667 = vpop.f32.mrb[0].mxu0
      %v668 = vadd.f32 0.0, %v667
      %v669 = vpop.f32.mrb[0].mxu0
      %v670 = vpop.f32.mrb[0].mxu0
      %v671 = vadd.f32 0.0, %v670
      %v672 = vpop.f32.mrb[0].mxu0
      %673 = vmatprep.mubr.bf16.mxu0 0
      %674 = vmatmul.mubr.bf16.gmra.mrb[0].mxu0 %v534
      %v675 = vpop.f32.mrb[0].mxu0
      %v676 = vadd.f32 0.0, %v675
      %v677 = vpop.f32.mrb[0].mxu0
      %v678 = vpop.f32.mrb[0].mxu0
      %v679 = vadd.f32 0.0, %v678
      %v680 = vpop.f32.mrb[0].mxu0
      %681 = vmatprep.mubr.bf16.mxu0 0
      %682 = vmatmul.mubr.bf16.gmra.mrb[0].mxu0 %v535
      %v683 = vpop.f32.mrb[0].mxu0
      %v684 = vadd.f32 0.0, %v683
      %v685 = vpop.f32.mrb[0].mxu0
      %v686 = vpop.f32.mrb[0].mxu0
      %v687 = vadd.f32 0.0, %v686
      %v688 = vpop.f32.mrb[0].mxu0
      %689 = vmatprep.mubr.bf16.mxu0 0
      %690 = vmatmul.mubr.bf16.gmra.mrb[0].mxu0 %v536
      %v691 = vpop.f32.mrb[0].mxu0
      %v692 = vadd.f32 0.0, %v691
      %v693 = vpop.f32.mrb[0].mxu0
      %v694 = vpop.f32.mrb[0].mxu0
      %v695 = vadd.f32 0.0, %v694
      %v696 = vpop.f32.mrb[0].mxu0
      %697 = vdwg.mxu0
      %v714 = vunpack.c.l.b16 %v497
      %v715 = vunpack.c.l.b16 %v498
      %v716 = vunpack.c.l.b16 %v499
      %v717 = vunpack.c.l.b16 %v500
      %v718 = vunpack.c.l.b16 %v501
      %v719 = vunpack.c.l.b16 %v502
      %v720 = vunpack.c.l.b16 %v503
      %v721 = vunpack.c.l.b16 %v504
      %v722 = vunpack.c.l.b16 %v505
      %v723 = vunpack.c.l.b16 %v506
      %v724 = vunpack.c.l.b16 %v507
      %v725 = vunpack.c.l.b16 %v508
      %v726 = vunpack.c.l.b16 %v509
      %v727 = vunpack.c.l.b16 %v510
      %v728 = vunpack.c.l.b16 %v511
      %v729 = vunpack.c.l.b16 %v512
      %v730 = vpack.c.b16 %v715, %v714
      %v731 = vpack.c.b16 %v717, %v716
      %v732 = vpack.c.b16 %v719, %v718
      %v733 = vpack.c.b16 %v721, %v720
      %v734 = vpack.c.b16 %v723, %v722
      %v735 = vpack.c.b16 %v725, %v724
      %v736 = vpack.c.b16 %v727, %v726
      %v737 = vpack.c.b16 %v729, %v728
      %v762 = vunpack.c.l.b16 %v513
      %v763 = vunpack.c.l.b16 %v514
      %v764 = vunpack.c.l.b16 %v515
      %v765 = vunpack.c.l.b16 %v516
      %v766 = vunpack.c.l.b16 %v517
      %v767 = vunpack.c.l.b16 %v518
      %v768 = vunpack.c.l.b16 %v519
      %v769 = vunpack.c.l.b16 %v520
      %v770 = vunpack.c.l.b16 %v521
      %v771 = vunpack.c.l.b16 %v522
      %v772 = vunpack.c.l.b16 %v523
      %v773 = vunpack.c.l.b16 %v524
      %v774 = vunpack.c.l.b16 %v525
      %v775 = vunpack.c.l.b16 %v526
      %v776 = vunpack.c.l.b16 %v527
      %v777 = vunpack.c.l.b16 %v528
      %v778 = vpack.c.b16 %v763, %v762
      %v779 = vpack.c.b16 %v765, %v764
      %v780 = vpack.c.b16 %v767, %v766
      %v781 = vpack.c.b16 %v769, %v768
      %v782 = vpack.c.b16 %v771, %v770
      %v783 = vpack.c.b16 %v773, %v772
      %v784 = vpack.c.b16 %v775, %v774
      %v785 = vpack.c.b16 %v777, %v776
      %794 = vmatprep.subr.bf16.mxu0 0
      %795 = vmatpush1.bf16.msra.mxu0 %v778
      %796 = vmatprep.subr.bf16.mxu0 0
      %797 = vmatpush1.bf16.msra.mxu0 %v779
      %798 = vmatprep.subr.bf16.mxu0 0
      %799 = vmatpush1.bf16.msra.mxu0 %v780
      %800 = vmatprep.subr.bf16.mxu0 0
      %801 = vmatpush1.bf16.msra.mxu0 %v781
      %802 = vmatprep.subr.bf16.mxu0 0
      %803 = vmatpush1.bf16.msra.mxu0 %v782
      %804 = vmatprep.subr.bf16.mxu0 0
      %805 = vmatpush1.bf16.msra.mxu0 %v783
      %806 = vmatprep.subr.bf16.mxu0 0
      %807 = vmatpush1.bf16.msra.mxu0 %v784
      %808 = vmatprep.subr.bf16.mxu0 0
      %809 = vmatpush1.bf16.msra.mxu0 %v785
      %810 = vmatprep.subr.bf16.mxu0 0
      %811 = vmatpush1.bf16.msra.mxu0 0
      %812 = vmatprep.subr.bf16.mxu0 0
      %813 = vmatpush1.bf16.msra.mxu0 0
      %814 = vmatprep.subr.bf16.mxu0 0
      %815 = vmatpush1.bf16.msra.mxu0 0
      %816 = vmatprep.subr.bf16.mxu0 0
      %817 = vmatpush1.bf16.msra.mxu0 0
      %818 = vmatprep.subr.bf16.mxu0 0
      %819 = vmatpush1.bf16.msra.mxu0 0
      %820 = vmatprep.subr.bf16.mxu0 0
      %821 = vmatpush1.bf16.msra.mxu0 0
      %822 = vmatprep.subr.bf16.mxu0 0
      %823 = vmatpush1.bf16.msra.mxu0 0
      %824 = vmatprep.subr.bf16.mxu0 0
      %825 = vmatpush1.bf16.msra.mxu0 0
      %826 = vmatprep.mubr.bf16.mxu0 0
      %827 = vmatmul.mubr.bf16.gmra.mrb[0].mxu0 %v730
      %v828 = vpop.f32.mrb[0].mxu0
      %v829 = vadd.f32 %v636, %v828
      %v830 = vpop.f32.mrb[0].mxu0
      %v831 = vpop.f32.mrb[0].mxu0
      %v832 = vadd.f32 %v639, %v831
      %v833 = vpop.f32.mrb[0].mxu0
      %834 = vmatprep.mubr.bf16.mxu0 0
      %835 = vmatmul.mubr.bf16.gmra.mrb[0].mxu0 %v731
      %v836 = vpop.f32.mrb[0].mxu0
      %v837 = vadd.f32 %v644, %v836
      %v838 = vpop.f32.mrb[0].mxu0
      %v839 = vpop.f32.mrb[0].mxu0
      %v840 = vadd.f32 %v647, %v839
      %v841 = vpop.f32.mrb[0].mxu0
      %842 = vmatprep.mubr.bf16.mxu0 0
      %843 = vmatmul.mubr.bf16.gmra.mrb[0].mxu0 %v732
      %v844 = vpop.f32.mrb[0].mxu0
      %v845 = vadd.f32 %v652, %v844
      %v846 = vpop.f32.mrb[0].mxu0
      %v847 = vpop.f32.mrb[0].mxu0
      %v848 = vadd.f32 %v655, %v847
      %v849 = vpop.f32.mrb[0].mxu0
      %850 = vmatprep.mubr.bf16.mxu0 0
      %851 = vmatmul.mubr.bf16.gmra.mrb[0].mxu0 %v733
      %v852 = vpop.f32.mrb[0].mxu0
      %v853 = vadd.f32 %v660, %v852
      %v854 = vpop.f32.mrb[0].mxu0
      %v855 = vpop.f32.mrb[0].mxu0
      %v856 = vadd.f32 %v663, %v855
      %v857 = vpop.f32.mrb[0].mxu0
      %858 = vmatprep.mubr.bf16.mxu0 0
      %859 = vmatmul.mubr.bf16.gmra.mrb[0].mxu0 %v734
      %v860 = vpop.f32.mrb[0].mxu0
      %v861 = vadd.f32 %v668, %v860
      %v862 = vpop.f32.mrb[0].mxu0
      %v863 = vpop.f32.mrb[0].mxu0
      %v864 = vadd.f32 %v671, %v863
      %v865 = vpop.f32.mrb[0].mxu0
      %866 = vmatprep.mubr.bf16.mxu0 0
      %867 = vmatmul.mubr.bf16.gmra.mrb[0].mxu0 %v735
      %v868 = vpop.f32.mrb[0].mxu0
      %v869 = vadd.f32 %v676, %v868
      %v870 = vpop.f32.mrb[0].mxu0
      %v871 = vpop.f32.mrb[0].mxu0
      %v872 = vadd.f32 %v679, %v871
      %v873 = vpop.f32.mrb[0].mxu0
      %874 = vmatprep.mubr.bf16.mxu0 0
      %875 = vmatmul.mubr.bf16.gmra.mrb[0].mxu0 %v736
      %v876 = vpop.f32.mrb[0].mxu0
      %v877 = vadd.f32 %v684, %v876
      %v878 = vpop.f32.mrb[0].mxu0
      %v879 = vpop.f32.mrb[0].mxu0
      %v880 = vadd.f32 %v687, %v879
      %v881 = vpop.f32.mrb[0].mxu0
      %882 = vmatprep.mubr.bf16.mxu0 0
      %883 = vmatmul.mubr.bf16.gmra.mrb[0].mxu0 %v737
      %v884 = vpop.f32.mrb[0].mxu0
      %v885 = vadd.f32 %v692, %v884
      %v886 = vpop.f32.mrb[0].mxu0
      %v887 = vpop.f32.mrb[0].mxu0
      %v888 = vadd.f32 %v695, %v887
      %v889 = vpop.f32.mrb[0].mxu0
      %890 = vdwg.mxu0
      %v891 = vld [vmem:[%s5] sm:$0x1]
      %v893 = vlaneseq
      %v894 = vshrl.u32 %v893, 7
      %v895 = vsub.s32 0, %v894
      %v896 = vrot.slane %v891, %v895
      %v898 = vadd.f32 %v829, %v896
      %v899 = vadd.f32 %v832, %v896
      %v900 = vadd.f32 %v837, %v896
      %v901 = vadd.f32 %v840, %v896
      %v902 = vadd.f32 %v845, %v896
      %v903 = vadd.f32 %v848, %v896
      %v904 = vadd.f32 %v853, %v896
      %v905 = vadd.f32 %v856, %v896
      %v906 = vadd.f32 %v861, %v896
      %v907 = vadd.f32 %v864, %v896
      %v908 = vadd.f32 %v869, %v896
      %v909 = vadd.f32 %v872, %v896
      %v910 = vadd.f32 %v877, %v896
      %v911 = vadd.f32 %v880, %v896
      %v912 = vadd.f32 %v885, %v896
      %v913 = vadd.f32 %v888, %v896
      %v914 = vmax.f32 %v898, 0.0
      %v915 = vmax.f32 %v899, 0.0
      %v916 = vmax.f32 %v900, 0.0
      %v917 = vmax.f32 %v901, 0.0
      %v918 = vmax.f32 %v902, 0.0
      %v919 = vmax.f32 %v903, 0.0
      %v920 = vmax.f32 %v904, 0.0
      %v921 = vmax.f32 %v905, 0.0
      %v922 = vmax.f32 %v906, 0.0
      %v923 = vmax.f32 %v907, 0.0
      %v924 = vmax.f32 %v908, 0.0
      %v925 = vmax.f32 %v909, 0.0
      %v926 = vmax.f32 %v910, 0.0
      %v927 = vmax.f32 %v911, 0.0
      %v928 = vmax.f32 %v912, 0.0
      %v929 = vmax.f32 %v913, 0.0
      %v930 = vlaneseq
      %v931 = vand.u32 %v930, 127
      %vm932 = vcmp.eq.s32.totalorder %v931, 127
      %v933 = vsel %vm932, 1.0, %v914
      %v934 = vsel %vm932, 1.0, %v915
      %v935 = vsel %vm932, 1.0, %v916
      %v936 = vsel %vm932, 1.0, %v917
      %v937 = vsel %vm932, 1.0, %v918
      %v938 = vsel %vm932, 1.0, %v919
      %v939 = vsel %vm932, 1.0, %v920
      %v940 = vsel %vm932, 1.0, %v921
      %v941 = vsel %vm932, 1.0, %v922
      %v942 = vsel %vm932, 1.0, %v923
      %v943 = vsel %vm932, 1.0, %v924
      %v944 = vsel %vm932, 1.0, %v925
      %v945 = vsel %vm932, 1.0, %v926
      %v946 = vsel %vm932, 1.0, %v927
      %v947 = vsel %vm932, 1.0, %v928
      %v948 = vsel %vm932, 1.0, %v929
      %v949 = vpack.c.bf16 %v934, %v933
      %v950 = vpack.c.bf16 %v936, %v935
      %v951 = vpack.c.bf16 %v938, %v937
      %v952 = vpack.c.bf16 %v940, %v939
      %v953 = vpack.c.bf16 %v942, %v941
      %v954 = vpack.c.bf16 %v944, %v943
      %v955 = vpack.c.bf16 %v946, %v945
      %v956 = vpack.c.bf16 %v948, %v947
      %v965 = vunpack.c.l.b16 %v949
      %v966 = vunpack.c.h.b16 %v949
      %v967 = vunpack.c.l.b16 %v950
      %v968 = vunpack.c.h.b16 %v950
      %v969 = vunpack.c.l.b16 %v951
      %v970 = vunpack.c.h.b16 %v951
      %v971 = vunpack.c.l.b16 %v952
      %v972 = vunpack.c.h.b16 %v952
      %v973 = vunpack.c.l.b16 %v953
      %v974 = vunpack.c.h.b16 %v953
      %v975 = vunpack.c.l.b16 %v954
      %v976 = vunpack.c.h.b16 %v954
      %v977 = vunpack.c.l.b16 %v955
      %v978 = vunpack.c.h.b16 %v955
      %v979 = vunpack.c.l.b16 %v956
      %v980 = vunpack.c.h.b16 %v956
      %v981 = vpack.c.b16 %v965, %v965
      %v982 = vpack.c.b16 %v966, %v966
      %v983 = vpack.c.b16 %v967, %v967
      %v984 = vpack.c.b16 %v968, %v968
      %v985 = vpack.c.b16 %v969, %v969
      %v986 = vpack.c.b16 %v970, %v970
      %v987 = vpack.c.b16 %v971, %v971
      %v988 = vpack.c.b16 %v972, %v972
      %v989 = vpack.c.b16 %v973, %v973
      %v990 = vpack.c.b16 %v974, %v974
      %v991 = vpack.c.b16 %v975, %v975
      %v992 = vpack.c.b16 %v976, %v976
      %v993 = vpack.c.b16 %v977, %v977
      %v994 = vpack.c.b16 %v978, %v978
      %v995 = vpack.c.b16 %v979, %v979
      %v996 = vpack.c.b16 %v980, %v980
      %1013 = vst [vmem:[#allocation12] sm:$0xf] %v981
      %1014 = vst [vmem:[#allocation12 + $0x4] sm:$0xf] %v982
      %1015 = vst [vmem:[#allocation12 + $0x8] sm:$0xf] %v983
      %1016 = vst [vmem:[#allocation12 + $0xc] sm:$0xf] %v984
      %1017 = vst [vmem:[#allocation12 + $0x10] sm:$0xf] %v985
      %1018 = vst [vmem:[#allocation12 + $0x14] sm:$0xf] %v986
      %1019 = vst [vmem:[#allocation12 + $0x18] sm:$0xf] %v987
      %1020 = vst [vmem:[#allocation12 + $0x1c] sm:$0xf] %v988
      %1021 = vst [vmem:[#allocation12 + $0x20] sm:$0xf] %v989
      %1022 = vst [vmem:[#allocation12 + $0x24] sm:$0xf] %v990
      %1023 = vst [vmem:[#allocation12 + $0x28] sm:$0xf] %v991
      %1024 = vst [vmem:[#allocation12 + $0x2c] sm:$0xf] %v992
      %1025 = vst [vmem:[#allocation12 + $0x30] sm:$0xf] %v993
      %1026 = vst [vmem:[#allocation12 + $0x34] sm:$0xf] %v994
      %1027 = vst [vmem:[#allocation12 + $0x38] sm:$0xf] %v995
      %1028 = vst [vmem:[#allocation12 + $0x3c] sm:$0xf] %v996
    $region53: #{tpu_custom_call.1} parent=1 // pred_fallthru
      _
    // Predicated region
    $region54: #{tpu_custom_call.1} parent=1 // pred_check
      _
    $region55: #{tpu_custom_call.1} parent=1 // pred_check_branch
      %1030 = sbr.rel (0) target = $region57
    $region56: #{tpu_custom_call.1} parent=1 // pred_region
      %s1032 = ssub.s32 1024, 1024
      %1033 = vsyncadd [#allocation5], %s1032
      %s1034 = sshll.u32 [#allocation12], 4
      %s1035 = int_to_ptr.vmem [resolvable:$true] %s1034
      %1040 = dma.vmem_to_hbm [thread:$0]  %s1035, 1024, %s6, [#allocation5], 64, 64, 4
    $region57: #{tpu_custom_call.1} parent=1 // pred_fallthru
      _
    // Predicated region
    $region58: #{tpu_custom_call.1} parent=1 // pred_check
      _
    $region59: #{tpu_custom_call.1} parent=1 // pred_check_branch
      %1042 = sbr.rel (0) target = $region61
    $region60: #{tpu_custom_call.1} parent=1 // pred_region
      %1043 = dma.done [#allocation5], 1024
    $region61: #{tpu_custom_call.1} parent=1 // pred_fallthru
      _
    %1044 = vsyncpa [#allocation4], 1
    %1045 = vsyncpa [#allocation7], 1
    %1046 = vsyncpa [#allocation10], 1
    %1047 = vsyncpa [#allocation5], 1

</llo_original>
